<compile_context>
chip_gen: v7x
topology: tpu7x:2x2x1
jax: 0.10.0
libtpu: 0.0.40
codegen_flags: <defaults>
</compile_context>

<pallas_src>
import functools
from typing import NamedTuple

import jax
import jax.numpy as jnp
import numpy as np
from jax.experimental import pallas as pl
from jax.experimental.pallas import tpu as pltpu


_NEG_SLOPE = 0.01          # PyTorch F.leaky_relu default
_MXU_DTYPE = jnp.bfloat16  # MXU operand dtype (accumulation stays f32)
_LANE = 128


def _round_up(v, m):
    return (v + m - 1) // m * m


class _Cfg(NamedTuple):
    K: int
    depth: int
    B_blk: int
    L0: int      # upconv output length
    L_up: int    # `upsampled` length (after pre-shortcut convs)
    L_comb: int  # final `combined` length
    off_sc: int  # centre-crop offset of the shortcut w.r.t. `upsampled`


# ---------------------------------------------------------------------------
# Fused kernel: one batch-block = upconv + pre convs + crop/concat + post convs
# ---------------------------------------------------------------------------
def _fused_block_kernel(cfg: _Cfg, *refs):
    K, depth, B_blk = cfg.K, cfg.depth, cfg.B_blk
    it = iter(refs)
    x_ref = next(it)                              # (B_blk, n_in, L_dil)      bf16
    sc_ref = next(it)                             # (B_blk, n_short, L_short) bf16
    w_up_ref, b_up_ref = next(it), next(it)       # (n_in, K*n_in) bf16, (n_in,1) f32
    pre = [(next(it), next(it)) for _ in range(depth)]
    post = [(next(it), next(it)) for _ in range(depth)]
    o_comb_ref = next(it)                         # (B_blk, n_out, Lc_pad) f32
    o_up_ref = next(it)                           # (B_blk, n_out, Lu_pad) f32

    # Activation "pieces" are exposed through tiny getters so inputs (3-D refs)
    # and intermediate values (2-D (C, B_blk*L) lane-blocked layout) are handled
    # uniformly when the im2col operand is built.
    def from3d(ref):
        val = ref[...]
        return lambda bi, s, n: val[bi, :, s:s + n]

    def from2d(val, l_per_b):
        return lambda bi, s, n: val[:, bi * l_per_b + s: bi * l_per_b + s + n]

    def conv_lrelu(pieces, w_ref, b_ref, out_len):
        # pieces: [(getter, crop_offset)], channel order per tap == torch.cat order.
        # Builds the tap-major im2col operand (K*C_total, B_blk*out_len) and does
        # ONE MXU dot with the (C_out, K*C_total) weight slab.  The concat +
        # centre_crop of the post convs is fused here (crop = static offset).
        tap_blocks = []
        for t in range(K):
            cols = []
            for bi in range(B_blk):
                rows = [get(bi, off + t, out_len) for (get, off) in pieces]
                cols.append(rows[0] if len(rows) == 1
                            else jnp.concatenate(rows, axis=0))
            tap_blocks.append(cols[0] if B_blk == 1
                              else jnp.concatenate(cols, axis=1))
        stacked = tap_blocks[0] if K == 1 else jnp.concatenate(tap_blocks, axis=0)
        acc = jnp.dot(w_ref[...], stacked, preferred_element_type=jnp.float32)
        acc = acc + b_ref[...]                                  # (C_out, 1) f32
        return jnp.maximum(acc, _NEG_SLOPE * acc)               # LeakyReLU(0.01)

    def store_padded(o_ref, val, out_len):
        # val: f32 (C_out, B_blk*out_len); pad each element to the lane-padded
        # output width so the HBM store is unmasked (lane-dense).
        l_pad = o_ref.shape[-1]
        c_out = val.shape[0]
        for bi in range(B_blk):
            v = val[:, bi * out_len:(bi + 1) * out_len]
            if l_pad > out_len:
                v = jnp.concatenate(
                    [v, jnp.zeros((c_out, l_pad - out_len), v.dtype)], axis=1)
            o_ref[bi] = v.astype(o_ref.dtype)

    # ---- upconv: ConvTranspose1d(n_in, n_in, K, stride, padding=K-1) + lrelu ----
    # (expressed as a VALID conv over the interior-dilated input; the dilated
    # zero rows are extra contraction rows inside the same MXU pass => ~free)
    a = conv_lrelu([(from3d(x_ref), 0)], w_up_ref, b_up_ref, cfg.L0)
    cur_len = cfg.L0

    # ---- pre-shortcut convs (activations stay f32 values; no scratch) ----------
    for l in range(depth):
        out_len = cur_len - (K - 1)
        a = conv_lrelu([(from2d(a.astype(_MXU_DTYPE), cur_len), 0)],
                       pre[l][0], pre[l][1], out_len)
        cur_len = out_len
    store_padded(o_up_ref, a, cfg.L_up)           # `upsampled` output (f32)

    # ---- post-shortcut convs: concat + centre_crop fused into the im2col -------
    up_b = a.astype(_MXU_DTYPE)                   # consumed by every post layer
    comb_get = from3d(sc_ref)                     # cropped shortcut (via offset)
    comb_off = cfg.off_sc
    in_len = cfg.L_up
    comb = None
    for l in range(depth):
        out_len = in_len - (K - 1)
        up_off = (cfg.L_up - in_len) // 2         # centre_crop(upsampled, combined)
        comb = conv_lrelu(
            [(comb_get, comb_off), (from2d(up_b, cfg.L_up), up_off)],
            post[l][0], post[l][1], out_len)
        comb_get = from2d(comb.astype(_MXU_DTYPE), out_len)
        comb_off = 0
        in_len = out_len
    store_padded(o_comb_ref, comb, cfg.L_comb)    # `combined` output (f32)


# ---------------------------------------------------------------------------
# Wrapper
# ---------------------------------------------------------------------------
def _weight_slab(w):
    """(C_out, C_in, K) conv weight -> (C_out, K*C_in) bf16 slab (tap-major)."""
    co, ci, k = w.shape
    return jnp.transpose(w, (0, 2, 1)).reshape(co, k * ci).astype(_MXU_DTYPE)


def _bias_col(b):
    return b.reshape(-1, 1).astype(jnp.float32)


def upsampling_block_forward(x, shortcut, params, *, stride, kernel_size):
    """Fused UpsamplingBlock forward.

    x:        (B, n_inputs, L_in)      float32
    shortcut: (B, n_shortcut, L_short) float32
    params:   {"upconv": (wt, b), "pre": [(w, b), ...], "post": [(w, b), ...]}
              in PyTorch layouts (ConvTranspose1d: (in, out, K); Conv1d: (out, in, K)).
    Returns (combined, upsampled), matching the PyTorch module.
    """
    B, n_in, L_in = x.shape
    Bs, n_short, L_short = shortcut.shape
    assert Bs == B
    K = kernel_size
    assert stride > 1
    depth = len(params["pre"])
    assert depth >= 1 and len(params["post"]) == depth
    n_out = params["pre"][0][0].shape[0]

    # Length arithmetic (identical to the PyTorch module).
    L_dil = (L_in - 1) * stride + 1
    L0 = L_dil - K + 1                       # upconv output
    L_up = L0 - depth * (K - 1)              # after pre-shortcut convs
    L_comb = L_up - depth * (K - 1)          # after post-shortcut convs
    assert L_comb >= 1
    diff = L_short - L_up
    assert diff >= 0 and diff % 2 == 0, "centre_crop needs an even length difference"
    off_sc = diff // 2

    # Batch folding: largest divisor of B up to 8 per grid step.
    B_blk = max(d for d in range(1, min(B, 8) + 1) if B % d == 0)
    n_steps = B // B_blk

    # Lane-padded output widths (unmasked stores; sliced back below).
    Lc_pad = _round_up(L_comb, _LANE)
    Lu_pad = _round_up(L_up, _LANE)

    # --- input preparation (pure layout work, fused by XLA under jit) ----------
    # Interior-dilate x for the transposed conv via lax.pad (bf16, no scatter).
    # TODO(synk): polyphase upconv to avoid reading the dilated signal at all.
    x_dil = jax.lax.pad(x.astype(_MXU_DTYPE), jnp.zeros((), _MXU_DTYPE),
                        ((0, 0, 0), (0, 0, 0), (0, 0, stride - 1)))
    sc_b = shortcut.astype(_MXU_DTYPE)

    wt, bt = params["upconv"]                # ConvTranspose1d weight (in, out, K)
    assert wt.shape == (n_in, n_in, K)
    # Equivalent VALID-conv weight: swap in/out channels and flip taps.
    w_up = _weight_slab(jnp.flip(jnp.transpose(wt, (1, 0, 2)), axis=-1))
    b_up = _bias_col(bt)

    inputs = [x_dil, sc_b, w_up, b_up]
    for l, (w, b) in enumerate(params["pre"]):
        cin = n_in if l == 0 else n_out
        assert w.shape == (n_out, cin, K)
        inputs += [_weight_slab(w), _bias_col(b)]
    c_prev = n_short
    for (w, b) in params["post"]:
        assert w.shape == (n_out, c_prev + n_out, K), (
            "post-shortcut conv channel mismatch (the reference module is only "
            "self-consistent for depth == 1, its default)")
        inputs += [_weight_slab(w), _bias_col(b)]   # full slab; cat fused in-kernel
        c_prev = n_out

    cfg = _Cfg(K=K, depth=depth, B_blk=B_blk, L0=L0, L_up=L_up, L_comb=L_comb,
               off_sc=off_sc)

    in_specs = [
        pl.BlockSpec((B_blk, n_in, L_dil), lambda i: (i, 0, 0)),
        pl.BlockSpec((B_blk, n_short, L_short), lambda i: (i, 0, 0)),
    ]
    # TODO(synk): pipeline_mode=pl.Buffered(1) for these never-changing weights.
    in_specs += [pl.BlockSpec(a.shape, lambda i: (0, 0)) for a in inputs[2:]]

    out_shape = (
        jax.ShapeDtypeStruct((B, n_out, Lc_pad), jnp.float32),   # combined (padded)
        jax.ShapeDtypeStruct((B, n_out, Lu_pad), jnp.float32),   # upsampled (padded)
    )
    out_specs = (
        pl.BlockSpec((B_blk, n_out, Lc_pad), lambda i: (i, 0, 0)),
        pl.BlockSpec((B_blk, n_out, Lu_pad), lambda i: (i, 0, 0)),
    )

    # Advisory cost estimate (MXU flops + HBM bytes) for the XLA scheduler.
    flops = 2 * B * n_in * (K * n_in) * L0
    cur, cin = L0, n_in
    for l in range(depth):
        out = cur - (K - 1)
        flops += 2 * B * n_out * (K * cin) * out
        cur, cin = out, n_out
    cur, cprev = L_up, n_short
    for l in range(depth):
        out = cur - (K - 1)
        flops += 2 * B * n_out * (K * (cprev + n_out)) * out
        cur, cprev = out, n_out
    bytes_accessed = sum(int(a.size) * int(jnp.dtype(a.dtype).itemsize) for a in inputs)
    bytes_accessed += B * n_out * (Lc_pad + Lu_pad) * 4
    cost = pl.CostEstimate(flops=int(flops), transcendentals=0,
                           bytes_accessed=int(bytes_accessed))

    combined_p, upsampled_p = pl.pallas_call(
        functools.partial(_fused_block_kernel, cfg),
        out_shape=out_shape,
        grid=(n_steps,),
        in_specs=in_specs,
        out_specs=out_specs,
        compiler_params=pltpu.CompilerParams(
            dimension_semantics=("parallel",)),
        cost_estimate=cost,
    )(*inputs)

    # Slice the lane padding back off (cheap XLA slice).
    return combined_p[:, :, :L_comb], upsampled_p[:, :, :L_up]


# ---------------------------------------------------------------------------
# Pure-JAX reference (mirrors the kernel's precision: bf16 MXU operands,
# f32 accumulation, f32 activations carried between layers) + params
# ---------------------------------------------------------------------------
def _ref_conv_lrelu(x, w, b):
    xb = x.astype(jnp.bfloat16).astype(jnp.float32)
    wb = w.astype(jnp.bfloat16).astype(jnp.float32)
    K = w.shape[-1]
    L_out = x.shape[-1] - K + 1
    acc = jnp.zeros((x.shape[0], w.shape[0], L_out), jnp.float32)
    for t in range(K):
        acc = acc + jnp.einsum("oc,bcl->bol", wb[:, :, t], xb[:, :, t:t + L_out],
                               precision=jax.lax.Precision.HIGHEST)
    acc = acc + b[None, :, None]
    return jnp.maximum(acc, _NEG_SLOPE * acc)


def reference_forward(x, shortcut, params, *, stride, kernel_size):
    wt, bt = params["upconv"]
    w_up = jnp.flip(jnp.transpose(wt, (1, 0, 2)), axis=-1)
    x_dil = jax.lax.pad(x, jnp.zeros((), x.dtype),
                        ((0, 0, 0), (0, 0, 0), (0, 0, stride - 1)))
    a = _ref_conv_lrelu(x_dil, w_up, bt)
    for (w, b) in params["pre"]:
        a = _ref_conv_lrelu(a, w, b)
    upsampled = a
    L_up = upsampled.shape[-1]
    off = (shortcut.shape[-1] - L_up) // 2
    comb = shortcut[:, :, off:off + L_up]
    for (w, b) in params["post"]:
        crop = (L_up - comb.shape[-1]) // 2
        up_c = upsampled[:, :, crop:crop + comb.shape[-1]]
        comb = _ref_conv_lrelu(jnp.concatenate([comb, up_c], axis=1), w, b)
    return comb, upsampled


def make_params(key, n_inputs, n_shortcut, n_outputs, kernel_size, depth):
    """Same parameter shapes as the PyTorch module __init__ (depth=1 is the repo
    default and the only depth for which the reference forward is consistent)."""
    keys = jax.random.split(key, 2 * (1 + 2 * depth))
    ki = iter(keys)

    def w_init(k, shape):
        return jax.random.normal(k, shape, jnp.float32) * 0.1

    def b_init(k, shape):
        return jax.random.normal(k, shape, jnp.float32) * 0.01

    params = {
        "upconv": (w_init(next(ki), (n_inputs, n_inputs, kernel_size)),
                   b_init(next(ki), (n_inputs,)))
    }
    pre = [(w_init(next(ki), (n_outputs, n_inputs, kernel_size)),
            b_init(next(ki), (n_outputs,)))]
    for _ in range(depth - 1):
        pre.append((w_init(next(ki), (n_outputs, n_outputs, kernel_size)),
                    b_init(next(ki), (n_outputs,))))
    params["pre"] = pre
    post = [(w_init(next(ki), (n_outputs, n_outputs + n_shortcut, kernel_size)),
             b_init(next(ki), (n_outputs,)))]
    for _ in range(depth - 1):
        post.append((w_init(next(ki), (n_outputs, n_outputs, kernel_size)),
                     b_init(next(ki), (n_outputs,))))
    params["post"] = post
    return params


if __name__ == "__main__":
    n_inputs, n_shortcut, n_outputs = 4, 8, 8
    kernel_size, stride, depth = 5, 2, 1   # depth=1: repo default
    B, L_in = 2, 16

    L_up = (L_in - 1) * stride - kernel_size + 2 - depth * (kernel_size - 1)   # 23
    L_comb = L_up - depth * (kernel_size - 1)                                  # 19
    L_short = L_up + 4                                                         # 27

    key = jax.random.PRNGKey(0)
    kx, ks, kp = jax.random.split(key, 3)
    x = jax.random.normal(kx, (B, n_inputs, L_in), jnp.float32)
    shortcut = jax.random.normal(ks, (B, n_shortcut, L_short), jnp.float32)
    params = make_params(kp, n_inputs, n_shortcut, n_outputs, kernel_size, depth)

    fwd = jax.jit(upsampling_block_forward,
                  static_argnames=("stride", "kernel_size"))
    combined, upsampled = fwd(x, shortcut, params,
                              stride=stride, kernel_size=kernel_size)
    jax.block_until_ready((combined, upsampled))

    assert upsampled.shape == (B, n_outputs, L_up), upsampled.shape
    assert combined.shape == (B, n_outputs, L_comb), combined.shape

    ref_comb, ref_up = reference_forward(x, shortcut, params,
                                         stride=stride, kernel_size=kernel_size)
    np.testing.assert_allclose(np.asarray(upsampled), np.asarray(ref_up),
                               rtol=1e-2, atol=1e-2)
    np.testing.assert_allclose(np.asarray(combined), np.asarray(ref_comb),
                               rtol=1e-2, atol=1e-2)

    print("KERNEL_OK")
</pallas_src>

<mosaic_0001>
module attributes {stable_mosaic.version = 11 : i64} {
  func.func @_fused_block_kernel(%arg0: i32, %arg1: memref<2x4x31xbf16, #tpu.memory_space<vmem>>, %arg2: memref<2x8x27xbf16, #tpu.memory_space<vmem>>, %arg3: memref<4x20xbf16, #tpu.memory_space<vmem>>, %arg4: memref<4x1xf32, #tpu.memory_space<vmem>>, %arg5: memref<8x20xbf16, #tpu.memory_space<vmem>>, %arg6: memref<8x1xf32, #tpu.memory_space<vmem>>, %arg7: memref<8x80xbf16, #tpu.memory_space<vmem>>, %arg8: memref<8x1xf32, #tpu.memory_space<vmem>>, %arg9: memref<2x8x128xf32, #tpu.memory_space<vmem>>, %arg10: memref<2x8x128xf32, #tpu.memory_space<vmem>>) attributes {dimension_semantics = [#tpu.dimension_semantics<parallel>], iteration_bounds = array<i64: 1>, scalar_prefetch = 0 : i64, scratch_operands = 0 : i64, tpu.core_type = #tpu.core_type<tc>, window_params = [{transform_indices = @transform_0, window_bounds = array<i64: 2, 4, 31>}, {transform_indices = @transform_1, window_bounds = array<i64: 2, 8, 27>}, {pipeline_mode = #tpu.pipeline_mode<synchronous>, transform_indices = @transform_2, window_bounds = array<i64: 4, 20>}, {pipeline_mode = #tpu.pipeline_mode<synchronous>, transform_indices = @transform_3, window_bounds = array<i64: 4, 1>}, {pipeline_mode = #tpu.pipeline_mode<synchronous>, transform_indices = @transform_4, window_bounds = array<i64: 8, 20>}, {pipeline_mode = #tpu.pipeline_mode<synchronous>, transform_indices = @transform_5, window_bounds = array<i64: 8, 1>}, {pipeline_mode = #tpu.pipeline_mode<synchronous>, transform_indices = @transform_6, window_bounds = array<i64: 8, 80>}, {pipeline_mode = #tpu.pipeline_mode<synchronous>, transform_indices = @transform_7, window_bounds = array<i64: 8, 1>}, {transform_indices = @transform_8, window_bounds = array<i64: 2, 8, 128>}, {transform_indices = @transform_9, window_bounds = array<i64: 2, 8, 128>}]} {
    %c0 = arith.constant 0 : index
    %c0_0 = arith.constant 0 : index
    %c0_1 = arith.constant 0 : index
    %0 = vector.load %arg1[%c0, %c0_0, %c0_1] : memref<2x4x31xbf16, #tpu.memory_space<vmem>>, vector<2x4x31xbf16>
    %1 = vector.extract_strided_slice %0 {offsets = [0, 0, 0], sizes = [1, 4, 27], strides = [1, 1, 1]} : vector<2x4x31xbf16> to vector<1x4x27xbf16>
    %2 = vector.shape_cast %1 : vector<1x4x27xbf16> to vector<4x27xbf16>
    %3 = vector.extract_strided_slice %0 {offsets = [1, 0, 0], sizes = [1, 4, 27], strides = [1, 1, 1]} : vector<2x4x31xbf16> to vector<1x4x27xbf16>
    %4 = vector.shape_cast %3 : vector<1x4x27xbf16> to vector<4x27xbf16>
    %5 = tpu.concatenate %2, %4 in 1 : vector<4x27xbf16>, vector<4x27xbf16> -> vector<4x54xbf16>
    %6 = vector.extract_strided_slice %0 {offsets = [0, 0, 1], sizes = [1, 4, 27], strides = [1, 1, 1]} : vector<2x4x31xbf16> to vector<1x4x27xbf16>
    %7 = vector.shape_cast %6 : vector<1x4x27xbf16> to vector<4x27xbf16>
    %8 = vector.extract_strided_slice %0 {offsets = [1, 0, 1], sizes = [1, 4, 27], strides = [1, 1, 1]} : vector<2x4x31xbf16> to vector<1x4x27xbf16>
    %9 = vector.shape_cast %8 : vector<1x4x27xbf16> to vector<4x27xbf16>
    %10 = tpu.concatenate %7, %9 in 1 : vector<4x27xbf16>, vector<4x27xbf16> -> vector<4x54xbf16>
    %11 = vector.extract_strided_slice %0 {offsets = [0, 0, 2], sizes = [1, 4, 27], strides = [1, 1, 1]} : vector<2x4x31xbf16> to vector<1x4x27xbf16>
    %12 = vector.shape_cast %11 : vector<1x4x27xbf16> to vector<4x27xbf16>
    %13 = vector.extract_strided_slice %0 {offsets = [1, 0, 2], sizes = [1, 4, 27], strides = [1, 1, 1]} : vector<2x4x31xbf16> to vector<1x4x27xbf16>
    %14 = vector.shape_cast %13 : vector<1x4x27xbf16> to vector<4x27xbf16>
    %15 = tpu.concatenate %12, %14 in 1 : vector<4x27xbf16>, vector<4x27xbf16> -> vector<4x54xbf16>
    %16 = vector.extract_strided_slice %0 {offsets = [0, 0, 3], sizes = [1, 4, 27], strides = [1, 1, 1]} : vector<2x4x31xbf16> to vector<1x4x27xbf16>
    %17 = vector.shape_cast %16 : vector<1x4x27xbf16> to vector<4x27xbf16>
    %18 = vector.extract_strided_slice %0 {offsets = [1, 0, 3], sizes = [1, 4, 27], strides = [1, 1, 1]} : vector<2x4x31xbf16> to vector<1x4x27xbf16>
    %19 = vector.shape_cast %18 : vector<1x4x27xbf16> to vector<4x27xbf16>
    %20 = tpu.concatenate %17, %19 in 1 : vector<4x27xbf16>, vector<4x27xbf16> -> vector<4x54xbf16>
    %21 = vector.extract_strided_slice %0 {offsets = [0, 0, 4], sizes = [1, 4, 27], strides = [1, 1, 1]} : vector<2x4x31xbf16> to vector<1x4x27xbf16>
    %22 = vector.shape_cast %21 : vector<1x4x27xbf16> to vector<4x27xbf16>
    %23 = vector.extract_strided_slice %0 {offsets = [1, 0, 4], sizes = [1, 4, 27], strides = [1, 1, 1]} : vector<2x4x31xbf16> to vector<1x4x27xbf16>
    %24 = vector.shape_cast %23 : vector<1x4x27xbf16> to vector<4x27xbf16>
    %25 = tpu.concatenate %22, %24 in 1 : vector<4x27xbf16>, vector<4x27xbf16> -> vector<4x54xbf16>
    %26 = tpu.concatenate %5, %10, %15, %20, %25 in 0 : vector<4x54xbf16>, vector<4x54xbf16>, vector<4x54xbf16>, vector<4x54xbf16>, vector<4x54xbf16> -> vector<20x54xbf16>
    %c0_2 = arith.constant 0 : index
    %c0_3 = arith.constant 0 : index
    %27 = vector.load %arg3[%c0_2, %c0_3] : memref<4x20xbf16, #tpu.memory_space<vmem>>, vector<4x20xbf16>
    %cst = arith.constant dense<0.000000e+00> : vector<4x54xf32>
    %28 = tpu.matmul %27, %26, %cst {dimension_numbers = #tpu.dot_dimension_numbers<[1], [0], [0], [1], [0, 0, 1, 1], [], []>} : vector<4x20xbf16>, vector<20x54xbf16>, vector<4x54xf32> -> vector<4x54xf32>
    %c0_4 = arith.constant 0 : index
    %c0_5 = arith.constant 0 : index
    %29 = vector.load %arg4[%c0_4, %c0_5] : memref<4x1xf32, #tpu.memory_space<vmem>>, vector<4x1xf32>
    %30 = vector.broadcast %29 : vector<4x1xf32> to vector<4x54xf32>
    %31 = arith.addf %28, %30 : vector<4x54xf32>
    %cst_6 = arith.constant 0.00999999977 : f32
    %32 = vector.broadcast %cst_6 : f32 to vector<4x54xf32>
    %33 = arith.mulf %32, %31 : vector<4x54xf32>
    %34 = arith.maximumf %31, %33 : vector<4x54xf32>
    %35 = arith.truncf %34 : vector<4x54xf32> to vector<4x54xbf16>
    %36 = vector.extract_strided_slice %35 {offsets = [0, 0], sizes = [4, 23], strides = [1, 1]} : vector<4x54xbf16> to vector<4x23xbf16>
    %37 = vector.extract_strided_slice %35 {offsets = [0, 27], sizes = [4, 23], strides = [1, 1]} : vector<4x54xbf16> to vector<4x23xbf16>
    %38 = tpu.concatenate %36, %37 in 1 : vector<4x23xbf16>, vector<4x23xbf16> -> vector<4x46xbf16>
    %39 = vector.extract_strided_slice %35 {offsets = [0, 1], sizes = [4, 23], strides = [1, 1]} : vector<4x54xbf16> to vector<4x23xbf16>
    %40 = vector.extract_strided_slice %35 {offsets = [0, 28], sizes = [4, 23], strides = [1, 1]} : vector<4x54xbf16> to vector<4x23xbf16>
    %41 = tpu.concatenate %39, %40 in 1 : vector<4x23xbf16>, vector<4x23xbf16> -> vector<4x46xbf16>
    %42 = vector.extract_strided_slice %35 {offsets = [0, 2], sizes = [4, 23], strides = [1, 1]} : vector<4x54xbf16> to vector<4x23xbf16>
    %43 = vector.extract_strided_slice %35 {offsets = [0, 29], sizes = [4, 23], strides = [1, 1]} : vector<4x54xbf16> to vector<4x23xbf16>
    %44 = tpu.concatenate %42, %43 in 1 : vector<4x23xbf16>, vector<4x23xbf16> -> vector<4x46xbf16>
    %45 = vector.extract_strided_slice %35 {offsets = [0, 3], sizes = [4, 23], strides = [1, 1]} : vector<4x54xbf16> to vector<4x23xbf16>
    %46 = vector.extract_strided_slice %35 {offsets = [0, 30], sizes = [4, 23], strides = [1, 1]} : vector<4x54xbf16> to vector<4x23xbf16>
    %47 = tpu.concatenate %45, %46 in 1 : vector<4x23xbf16>, vector<4x23xbf16> -> vector<4x46xbf16>
    %48 = vector.extract_strided_slice %35 {offsets = [0, 4], sizes = [4, 23], strides = [1, 1]} : vector<4x54xbf16> to vector<4x23xbf16>
    %49 = vector.extract_strided_slice %35 {offsets = [0, 31], sizes = [4, 23], strides = [1, 1]} : vector<4x54xbf16> to vector<4x23xbf16>
    %50 = tpu.concatenate %48, %49 in 1 : vector<4x23xbf16>, vector<4x23xbf16> -> vector<4x46xbf16>
    %51 = tpu.concatenate %38, %41, %44, %47, %50 in 0 : vector<4x46xbf16>, vector<4x46xbf16>, vector<4x46xbf16>, vector<4x46xbf16>, vector<4x46xbf16> -> vector<20x46xbf16>
    %c0_7 = arith.constant 0 : index
    %c0_8 = arith.constant 0 : index
    %52 = vector.load %arg5[%c0_7, %c0_8] : memref<8x20xbf16, #tpu.memory_space<vmem>>, vector<8x20xbf16>
    %cst_9 = arith.constant dense<0.000000e+00> : vector<8x46xf32>
    %53 = tpu.matmul %52, %51, %cst_9 {dimension_numbers = #tpu.dot_dimension_numbers<[1], [0], [0], [1], [0, 0, 1, 1], [], []>} : vector<8x20xbf16>, vector<20x46xbf16>, vector<8x46xf32> -> vector<8x46xf32>
    %c0_10 = arith.constant 0 : index
    %c0_11 = arith.constant 0 : index
    %54 = vector.load %arg6[%c0_10, %c0_11] : memref<8x1xf32, #tpu.memory_space<vmem>>, vector<8x1xf32>
    %55 = vector.broadcast %54 : vector<8x1xf32> to vector<8x46xf32>
    %56 = arith.addf %53, %55 : vector<8x46xf32>
    %cst_12 = arith.constant 0.00999999977 : f32
    %57 = vector.broadcast %cst_12 : f32 to vector<8x46xf32>
    %58 = arith.mulf %57, %56 : vector<8x46xf32>
    %59 = arith.maximumf %56, %58 : vector<8x46xf32>
    %60 = vector.extract_strided_slice %59 {offsets = [0, 0], sizes = [8, 23], strides = [1, 1]} : vector<8x46xf32> to vector<8x23xf32>
    %cst_13 = arith.constant 0.000000e+00 : f32
    %61 = vector.broadcast %cst_13 : f32 to vector<8x105xf32>
    %62 = tpu.concatenate %60, %61 in 1 : vector<8x23xf32>, vector<8x105xf32> -> vector<8x128xf32>
    %c0_14 = arith.constant 0 : index
    %c0_15 = arith.constant 0 : index
    %c0_16 = arith.constant 0 : index
    %63 = vector.load %arg10[%c0_14, %c0_15, %c0_16] : memref<2x8x128xf32, #tpu.memory_space<vmem>>, vector<1x8x128xf32>
    %64 = vector.shape_cast %63 : vector<1x8x128xf32> to vector<8x128xf32>
    %65 = vector.shape_cast %62 : vector<8x128xf32> to vector<1x8x128xf32>
    tpu.vector_store %arg10[%c0_14, %c0_15, %c0_16], %65 {strides = array<i32>} : memref<2x8x128xf32, #tpu.memory_space<vmem>>, vector<1x8x128xf32>,
    %66 = vector.extract_strided_slice %59 {offsets = [0, 23], sizes = [8, 23], strides = [1, 1]} : vector<8x46xf32> to vector<8x23xf32>
    %cst_17 = arith.constant 0.000000e+00 : f32
    %67 = vector.broadcast %cst_17 : f32 to vector<8x105xf32>
    %68 = tpu.concatenate %66, %67 in 1 : vector<8x23xf32>, vector<8x105xf32> -> vector<8x128xf32>
    %c1 = arith.constant 1 : index
    %c0_18 = arith.constant 0 : index
    %c0_19 = arith.constant 0 : index
    %69 = vector.load %arg10[%c1, %c0_18, %c0_19] : memref<2x8x128xf32, #tpu.memory_space<vmem>>, vector<1x8x128xf32>
    %70 = vector.shape_cast %69 : vector<1x8x128xf32> to vector<8x128xf32>
    %71 = vector.shape_cast %68 : vector<8x128xf32> to vector<1x8x128xf32>
    tpu.vector_store %arg10[%c1, %c0_18, %c0_19], %71 {strides = array<i32>} : memref<2x8x128xf32, #tpu.memory_space<vmem>>, vector<1x8x128xf32>,
    %72 = arith.truncf %59 : vector<8x46xf32> to vector<8x46xbf16>
    %c0_20 = arith.constant 0 : index
    %c0_21 = arith.constant 0 : index
    %c0_22 = arith.constant 0 : index
    %73 = vector.load %arg2[%c0_20, %c0_21, %c0_22] : memref<2x8x27xbf16, #tpu.memory_space<vmem>>, vector<2x8x27xbf16>
    %74 = vector.extract_strided_slice %73 {offsets = [0, 0, 2], sizes = [1, 8, 19], strides = [1, 1, 1]} : vector<2x8x27xbf16> to vector<1x8x19xbf16>
    %75 = vector.shape_cast %74 : vector<1x8x19xbf16> to vector<8x19xbf16>
    %76 = vector.extract_strided_slice %72 {offsets = [0, 0], sizes = [8, 19], strides = [1, 1]} : vector<8x46xbf16> to vector<8x19xbf16>
    %77 = tpu.concatenate %75, %76 in 0 : vector<8x19xbf16>, vector<8x19xbf16> -> vector<16x19xbf16>
    %78 = vector.extract_strided_slice %73 {offsets = [1, 0, 2], sizes = [1, 8, 19], strides = [1, 1, 1]} : vector<2x8x27xbf16> to vector<1x8x19xbf16>
    %79 = vector.shape_cast %78 : vector<1x8x19xbf16> to vector<8x19xbf16>
    %80 = vector.extract_strided_slice %72 {offsets = [0, 23], sizes = [8, 19], strides = [1, 1]} : vector<8x46xbf16> to vector<8x19xbf16>
    %81 = tpu.concatenate %79, %80 in 0 : vector<8x19xbf16>, vector<8x19xbf16> -> vector<16x19xbf16>
    %82 = tpu.concatenate %77, %81 in 1 : vector<16x19xbf16>, vector<16x19xbf16> -> vector<16x38xbf16>
    %83 = vector.extract_strided_slice %73 {offsets = [0, 0, 3], sizes = [1, 8, 19], strides = [1, 1, 1]} : vector<2x8x27xbf16> to vector<1x8x19xbf16>
    %84 = vector.shape_cast %83 : vector<1x8x19xbf16> to vector<8x19xbf16>
    %85 = vector.extract_strided_slice %72 {offsets = [0, 1], sizes = [8, 19], strides = [1, 1]} : vector<8x46xbf16> to vector<8x19xbf16>
    %86 = tpu.concatenate %84, %85 in 0 : vector<8x19xbf16>, vector<8x19xbf16> -> vector<16x19xbf16>
    %87 = vector.extract_strided_slice %73 {offsets = [1, 0, 3], sizes = [1, 8, 19], strides = [1, 1, 1]} : vector<2x8x27xbf16> to vector<1x8x19xbf16>
    %88 = vector.shape_cast %87 : vector<1x8x19xbf16> to vector<8x19xbf16>
    %89 = vector.extract_strided_slice %72 {offsets = [0, 24], sizes = [8, 19], strides = [1, 1]} : vector<8x46xbf16> to vector<8x19xbf16>
    %90 = tpu.concatenate %88, %89 in 0 : vector<8x19xbf16>, vector<8x19xbf16> -> vector<16x19xbf16>
    %91 = tpu.concatenate %86, %90 in 1 : vector<16x19xbf16>, vector<16x19xbf16> -> vector<16x38xbf16>
    %92 = vector.extract_strided_slice %73 {offsets = [0, 0, 4], sizes = [1, 8, 19], strides = [1, 1, 1]} : vector<2x8x27xbf16> to vector<1x8x19xbf16>
    %93 = vector.shape_cast %92 : vector<1x8x19xbf16> to vector<8x19xbf16>
    %94 = vector.extract_strided_slice %72 {offsets = [0, 2], sizes = [8, 19], strides = [1, 1]} : vector<8x46xbf16> to vector<8x19xbf16>
    %95 = tpu.concatenate %93, %94 in 0 : vector<8x19xbf16>, vector<8x19xbf16> -> vector<16x19xbf16>
    %96 = vector.extract_strided_slice %73 {offsets = [1, 0, 4], sizes = [1, 8, 19], strides = [1, 1, 1]} : vector<2x8x27xbf16> to vector<1x8x19xbf16>
    %97 = vector.shape_cast %96 : vector<1x8x19xbf16> to vector<8x19xbf16>
    %98 = vector.extract_strided_slice %72 {offsets = [0, 25], sizes = [8, 19], strides = [1, 1]} : vector<8x46xbf16> to vector<8x19xbf16>
    %99 = tpu.concatenate %97, %98 in 0 : vector<8x19xbf16>, vector<8x19xbf16> -> vector<16x19xbf16>
    %100 = tpu.concatenate %95, %99 in 1 : vector<16x19xbf16>, vector<16x19xbf16> -> vector<16x38xbf16>
    %101 = vector.extract_strided_slice %73 {offsets = [0, 0, 5], sizes = [1, 8, 19], strides = [1, 1, 1]} : vector<2x8x27xbf16> to vector<1x8x19xbf16>
    %102 = vector.shape_cast %101 : vector<1x8x19xbf16> to vector<8x19xbf16>
    %103 = vector.extract_strided_slice %72 {offsets = [0, 3], sizes = [8, 19], strides = [1, 1]} : vector<8x46xbf16> to vector<8x19xbf16>
    %104 = tpu.concatenate %102, %103 in 0 : vector<8x19xbf16>, vector<8x19xbf16> -> vector<16x19xbf16>
    %105 = vector.extract_strided_slice %73 {offsets = [1, 0, 5], sizes = [1, 8, 19], strides = [1, 1, 1]} : vector<2x8x27xbf16> to vector<1x8x19xbf16>
    %106 = vector.shape_cast %105 : vector<1x8x19xbf16> to vector<8x19xbf16>
    %107 = vector.extract_strided_slice %72 {offsets = [0, 26], sizes = [8, 19], strides = [1, 1]} : vector<8x46xbf16> to vector<8x19xbf16>
    %108 = tpu.concatenate %106, %107 in 0 : vector<8x19xbf16>, vector<8x19xbf16> -> vector<16x19xbf16>
    %109 = tpu.concatenate %104, %108 in 1 : vector<16x19xbf16>, vector<16x19xbf16> -> vector<16x38xbf16>
    %110 = vector.extract_strided_slice %73 {offsets = [0, 0, 6], sizes = [1, 8, 19], strides = [1, 1, 1]} : vector<2x8x27xbf16> to vector<1x8x19xbf16>
    %111 = vector.shape_cast %110 : vector<1x8x19xbf16> to vector<8x19xbf16>
    %112 = vector.extract_strided_slice %72 {offsets = [0, 4], sizes = [8, 19], strides = [1, 1]} : vector<8x46xbf16> to vector<8x19xbf16>
    %113 = tpu.concatenate %111, %112 in 0 : vector<8x19xbf16>, vector<8x19xbf16> -> vector<16x19xbf16>
    %114 = vector.extract_strided_slice %73 {offsets = [1, 0, 6], sizes = [1, 8, 19], strides = [1, 1, 1]} : vector<2x8x27xbf16> to vector<1x8x19xbf16>
    %115 = vector.shape_cast %114 : vector<1x8x19xbf16> to vector<8x19xbf16>
    %116 = vector.extract_strided_slice %72 {offsets = [0, 27], sizes = [8, 19], strides = [1, 1]} : vector<8x46xbf16> to vector<8x19xbf16>
    %117 = tpu.concatenate %115, %116 in 0 : vector<8x19xbf16>, vector<8x19xbf16> -> vector<16x19xbf16>
    %118 = tpu.concatenate %113, %117 in 1 : vector<16x19xbf16>, vector<16x19xbf16> -> vector<16x38xbf16>
    %119 = tpu.concatenate %82, %91, %100, %109, %118 in 0 : vector<16x38xbf16>, vector<16x38xbf16>, vector<16x38xbf16>, vector<16x38xbf16>, vector<16x38xbf16> -> vector<80x38xbf16>
    %c0_23 = arith.constant 0 : index
    %c0_24 = arith.constant 0 : index
    %120 = vector.load %arg7[%c0_23, %c0_24] : memref<8x80xbf16, #tpu.memory_space<vmem>>, vector<8x80xbf16>
    %cst_25 = arith.constant dense<0.000000e+00> : vector<8x38xf32>
    %121 = tpu.matmul %120, %119, %cst_25 {dimension_numbers = #tpu.dot_dimension_numbers<[1], [0], [0], [1], [0, 0, 1, 1], [], []>} : vector<8x80xbf16>, vector<80x38xbf16>, vector<8x38xf32> -> vector<8x38xf32>
    %c0_26 = arith.constant 0 : index
    %c0_27 = arith.constant 0 : index
    %122 = vector.load %arg8[%c0_26, %c0_27] : memref<8x1xf32, #tpu.memory_space<vmem>>, vector<8x1xf32>
    %123 = vector.broadcast %122 : vector<8x1xf32> to vector<8x38xf32>
    %124 = arith.addf %121, %123 : vector<8x38xf32>
    %cst_28 = arith.constant 0.00999999977 : f32
    %125 = vector.broadcast %cst_28 : f32 to vector<8x38xf32>
    %126 = arith.mulf %125, %124 : vector<8x38xf32>
    %127 = arith.maximumf %124, %126 : vector<8x38xf32>
    %128 = vector.extract_strided_slice %127 {offsets = [0, 0], sizes = [8, 19], strides = [1, 1]} : vector<8x38xf32> to vector<8x19xf32>
    %cst_29 = arith.constant 0.000000e+00 : f32
    %129 = vector.broadcast %cst_29 : f32 to vector<8x109xf32>
    %130 = tpu.concatenate %128, %129 in 1 : vector<8x19xf32>, vector<8x109xf32> -> vector<8x128xf32>
    %c0_30 = arith.constant 0 : index
    %c0_31 = arith.constant 0 : index
    %c0_32 = arith.constant 0 : index
    %131 = vector.load %arg9[%c0_30, %c0_31, %c0_32] : memref<2x8x128xf32, #tpu.memory_space<vmem>>, vector<1x8x128xf32>
    %132 = vector.shape_cast %131 : vector<1x8x128xf32> to vector<8x128xf32>
    %133 = vector.shape_cast %130 : vector<8x128xf32> to vector<1x8x128xf32>
    tpu.vector_store %arg9[%c0_30, %c0_31, %c0_32], %133 {strides = array<i32>} : memref<2x8x128xf32, #tpu.memory_space<vmem>>, vector<1x8x128xf32>,
    %134 = vector.extract_strided_slice %127 {offsets = [0, 19], sizes = [8, 19], strides = [1, 1]} : vector<8x38xf32> to vector<8x19xf32>
    %cst_33 = arith.constant 0.000000e+00 : f32
    %135 = vector.broadcast %cst_33 : f32 to vector<8x109xf32>
    %136 = tpu.concatenate %134, %135 in 1 : vector<8x19xf32>, vector<8x109xf32> -> vector<8x128xf32>
    %c1_34 = arith.constant 1 : index
    %c0_35 = arith.constant 0 : index
    %c0_36 = arith.constant 0 : index
    %137 = vector.load %arg9[%c1_34, %c0_35, %c0_36] : memref<2x8x128xf32, #tpu.memory_space<vmem>>, vector<1x8x128xf32>
    %138 = vector.shape_cast %137 : vector<1x8x128xf32> to vector<8x128xf32>
    %139 = vector.shape_cast %136 : vector<8x128xf32> to vector<1x8x128xf32>
    tpu.vector_store %arg9[%c1_34, %c0_35, %c0_36], %139 {strides = array<i32>} : memref<2x8x128xf32, #tpu.memory_space<vmem>>, vector<1x8x128xf32>,
    return
  }
  func.func @transform_0(%arg0: i32) -> (i32, i32, i32) {
    %c0_i32 = arith.constant 0 : i32
    %c0_i32_0 = arith.constant 0 : i32
    %c0_i32_1 = arith.constant 0 : i32
    return %arg0, %c0_i32, %c0_i32_0 : i32, i32, i32
  }
  func.func @transform_1(%arg0: i32) -> (i32, i32, i32) {
    %c0_i32 = arith.constant 0 : i32
    %c0_i32_0 = arith.constant 0 : i32
    %c0_i32_1 = arith.constant 0 : i32
    return %arg0, %c0_i32, %c0_i32_0 : i32, i32, i32
  }
  func.func @transform_2(%arg0: i32) -> (i32, i32) {
    %c0_i32 = arith.constant 0 : i32
    %c0_i32_0 = arith.constant 0 : i32
    %c0_i32_1 = arith.constant 0 : i32
    return %c0_i32, %c0_i32_0 : i32, i32
  }
  func.func @transform_3(%arg0: i32) -> (i32, i32) {
    %c0_i32 = arith.constant 0 : i32
    %c0_i32_0 = arith.constant 0 : i32
    %c0_i32_1 = arith.constant 0 : i32
    return %c0_i32, %c0_i32_0 : i32, i32
  }
  func.func @transform_4(%arg0: i32) -> (i32, i32) {
    %c0_i32 = arith.constant 0 : i32
    %c0_i32_0 = arith.constant 0 : i32
    %c0_i32_1 = arith.constant 0 : i32
    return %c0_i32, %c0_i32_0 : i32, i32
  }
  func.func @transform_5(%arg0: i32) -> (i32, i32) {
    %c0_i32 = arith.constant 0 : i32
    %c0_i32_0 = arith.constant 0 : i32
    %c0_i32_1 = arith.constant 0 : i32
    return %c0_i32, %c0_i32_0 : i32, i32
  }
  func.func @transform_6(%arg0: i32) -> (i32, i32) {
    %c0_i32 = arith.constant 0 : i32
    %c0_i32_0 = arith.constant 0 : i32
    %c0_i32_1 = arith.constant 0 : i32
    return %c0_i32, %c0_i32_0 : i32, i32
  }
  func.func @transform_7(%arg0: i32) -> (i32, i32) {
    %c0_i32 = arith.constant 0 : i32
    %c0_i32_0 = arith.constant 0 : i32
    %c0_i32_1 = arith.constant 0 : i32
    return %c0_i32, %c0_i32_0 : i32, i32
  }
  func.func @transform_8(%arg0: i32) -> (i32, i32, i32) {
    %c0_i32 = arith.constant 0 : i32
    %c0_i32_0 = arith.constant 0 : i32
    %c0_i32_1 = arith.constant 0 : i32
    return %arg0, %c0_i32, %c0_i32_0 : i32, i32, i32
  }
  func.func @transform_9(%arg0: i32) -> (i32, i32, i32) {
    %c0_i32 = arith.constant 0 : i32
    %c0_i32_0 = arith.constant 0 : i32
    %c0_i32_1 = arith.constant 0 : i32
    return %arg0, %c0_i32, %c0_i32_0 : i32, i32, i32
  }
}

</mosaic_0001>

<llo_original>
// kernel: upsampling_block_forward.1
$region0: #{upsampling_block_forward.1}
  #allocation0 [shape = 'u32[]', space=smem, size = 0x4, offset = 0x4, fixed_abs, tag = 'smem constant byte address 0x4 - core index']
  #allocation1 [shape = 'u32[144,128]{1,0:T(1,128)}', space=vmem, size = 0x12000, scoped, tag = 'internal scratch']
  %s0 = inlined_call_operand.vmem [shape: bf16[2,4,31], index: 0, kind: input, shape index: {}]
  %s1 = inlined_call_operand.vmem [shape: bf16[2,8,27], index: 1, kind: input, shape index: {}]
  %s2 = inlined_call_operand.vmem [shape: bf16[4,20], index: 2, kind: input, shape index: {}]
  %s3 = inlined_call_operand.vmem [shape: f32[4,1], index: 3, kind: input, shape index: {}]
  %s4 = inlined_call_operand.vmem [shape: bf16[8,20], index: 4, kind: input, shape index: {}]
  %s5 = inlined_call_operand.vmem [shape: f32[8,1], index: 5, kind: input, shape index: {}]
  %s6 = inlined_call_operand.vmem [shape: bf16[8,80], index: 6, kind: input, shape index: {}]
  %s7 = inlined_call_operand.vmem [shape: f32[8,1], index: 7, kind: input, shape index: {}]
  %s8 = inlined_call_operand.hbm [shape: f32[2,8,128], index: 8, kind: output, shape index: {0}]
  %s9 = inlined_call_operand.hbm [shape: f32[2,8,128], index: 9, kind: output, shape index: {1}]
  %10 = xla_tuple %s8, %s9
  %s11 = sld [smem:[#allocation0]]
  $region50: #{upsampling_block_forward.1} parent=0
    _
  %s13 = ssub.s32 1, %s11
  %s14 = scalar_select 0, %s13, %s11
  $region1: #{upsampling_block_forward.1} parent=0
    #allocation2 [shape = 'u8[8192]{0}', space=vmem, size = 0x2000, scoped, tag = 'output window, operand 0, single buffered']
    #allocation3 [shape = 's32[1]{0}', space=sflag, size = 0x4, scoped, tag = 'scoped memory for upsampling_block_forward.1']
    #allocation4 [shape = 'u8[8192]{0}', space=vmem, size = 0x2000, scoped, tag = 'output window, operand 1, single buffered']
    #allocation5 [shape = 's32[1]{0}', space=sflag, size = 0x4, scoped, tag = 'scoped memory for upsampling_block_forward.1']
    %15 = vsyncpa [#allocation3], 0
    %16 = vsyncpa [#allocation5], 0
    // Predicated region
    $region2: #{upsampling_block_forward.1} parent=1 // pred_check
      _
    $region3: #{upsampling_block_forward.1} parent=1 // pred_check_branch
      %18 = sbr.rel (0) target = $region5
    $region4: #{upsampling_block_forward.1} parent=1 // pred_region
      _
    $region5: #{upsampling_block_forward.1} parent=1 // pred_fallthru
      _
    // Predicated region
    $region6: #{upsampling_block_forward.1} parent=1 // pred_check
      _
    $region7: #{upsampling_block_forward.1} parent=1 // pred_check_branch
      %20 = sbr.rel (0) target = $region9
    $region8: #{upsampling_block_forward.1} parent=1 // pred_region
      _
    $region9: #{upsampling_block_forward.1} parent=1 // pred_fallthru
      _
    // Predicated region
    $region10: #{upsampling_block_forward.1} parent=1 // pred_check
      _
    $region11: #{upsampling_block_forward.1} parent=1 // pred_check_branch
      %22 = sbr.rel (0) target = $region13
    $region12: #{upsampling_block_forward.1} parent=1 // pred_region
      _
    $region13: #{upsampling_block_forward.1} parent=1 // pred_fallthru
      _
    // Predicated region
    $region14: #{upsampling_block_forward.1} parent=1 // pred_check
      _
    $region15: #{upsampling_block_forward.1} parent=1 // pred_check_branch
      %24 = sbr.rel (0) target = $region17
    $region16: #{upsampling_block_forward.1} parent=1 // pred_region
      _
    $region17: #{upsampling_block_forward.1} parent=1 // pred_fallthru
      _
    // Predicated region
    $region18: #{upsampling_block_forward.1} parent=1 // pred_check
      _
    $region19: #{upsampling_block_forward.1} parent=1 // pred_check_branch
      %26 = sbr.rel (0) target = $region21
    $region20: #{upsampling_block_forward.1} parent=1 // pred_region
      _
    $region21: #{upsampling_block_forward.1} parent=1 // pred_fallthru
      _
    // Predicated region
    $region22: #{upsampling_block_forward.1} parent=1 // pred_check
      _
    $region23: #{upsampling_block_forward.1} parent=1 // pred_check_branch
      %28 = sbr.rel (0) target = $region25
    $region24: #{upsampling_block_forward.1} parent=1 // pred_region
      _
    $region25: #{upsampling_block_forward.1} parent=1 // pred_fallthru
      _
    // Predicated region
    $region26: #{upsampling_block_forward.1} parent=1 // pred_check
      _
    $region27: #{upsampling_block_forward.1} parent=1 // pred_check_branch
      %30 = sbr.rel (0) target = $region29
    $region28: #{upsampling_block_forward.1} parent=1 // pred_region
      _
    $region29: #{upsampling_block_forward.1} parent=1 // pred_fallthru
      _
    // Predicated region
    $region30: #{upsampling_block_forward.1} parent=1 // pred_check
      _
    $region31: #{upsampling_block_forward.1} parent=1 // pred_check_branch
      %32 = sbr.rel (0) target = $region33
    $region32: #{upsampling_block_forward.1} parent=1 // pred_region
      _
    $region33: #{upsampling_block_forward.1} parent=1 // pred_fallthru
      _
    %v34 = vld [vmem:[%s0] sm:$0x3]
    %v35 = vld [vmem:[%s0 + $0x2] sm:$0x3]
    %v38 = vunpack.c.l.s4 1983009808
    %v39 = vunpack.c.0.s8 %v38
    %v40 = vlaneseq
    %v41 = vshrl.u32 %v40, 7
    %v42 = vsub.s32 %v39, %v41
    %v43 = vrot.slane %v35, %v42
    %44 = vrot.lane.b32.xlu0 %v43, 27
    %v45 = vpop.permute.xlu0 %44
    %vm46 = vcmask 220160
    %v49 = vsel %vm46, %v34, %v45
    %v52 = vunpack.c.l.s4 1983009808
    %v53 = vunpack.c.0.s8 %v52
    %v54 = vlaneseq
    %v55 = vshrl.u32 %v54, 7
    %v56 = vsub.s32 %v53, %v55
    %v57 = vrot.slane %v34, %v56
    %58 = vrot.lane.b32.xlu0 %v57, 127
    %v59 = vpop.permute.xlu0 %58
    %60 = vrot.lane.b32.xlu0 %v43, 26
    %v61 = vpop.permute.xlu0 %60
    %v64 = vsel %vm46, %v59, %v61
    %65 = vrot.lane.b32.xlu0 %v57, 126
    %v66 = vpop.permute.xlu0 %65
    %67 = vrot.lane.b32.xlu0 %v43, 25
    %v68 = vpop.permute.xlu0 %67
    %v71 = vsel %vm46, %v66, %v68
    %72 = vrot.lane.b32.xlu0 %v57, 125
    %v73 = vpop.permute.xlu0 %72
    %74 = vrot.lane.b32.xlu0 %v43, 24
    %v75 = vpop.permute.xlu0 %74
    %v78 = vsel %vm46, %v73, %v75
    %79 = vrot.lane.b32.xlu0 %v57, 124
    %v80 = vpop.permute.xlu0 %79
    %81 = vrot.lane.b32.xlu0 %v43, 23
    %v82 = vpop.permute.xlu0 %81
    %v85 = vsel %vm46, %v80, %v82
    %v87 = vrot.slane %v64, 6
    %v89 = vrot.slane %v71, 4
    %v91 = vrot.slane %v78, 2
    %vm92 = vcmask 1041408
    %v94 = vsel %vm92, %v49, %v87
    %vm95 = vcmask 1043456
    %v97 = vsel %vm95, %v94, %v89
    %vm98 = vcmask 1045504
    %v100 = vsel %vm98, %v97, %v91
    %v102 = vld [vmem:[%s2] sm:$0x3]
    %v103 = vld [vmem:[%s3] sm:$0xf]
    %105 = vset.pattern.permute.xlu0 0
    %106 = vperm.xlu0 %105, %v103
    %v107 = vpop.permute.xlu0 %106
    %vm109 = vcmask 162816
    %v111 = vsel %vm109, %v102, 0
    %v113 = vsel %vm92, %v85, 0
    %115 = vmatprep.subr.bf16.mxu0 0
    %116 = vmatpush1.bf16.msra.mxu0 %v100
    %117 = vmatprep.subr.bf16.mxu0 0
    %118 = vmatpush1.bf16.msra.mxu0 %v113
    %119 = vmatprep.subr.bf16.mxu0 0
    %120 = vmatpush1.bf16.msra.mxu0 0
    %121 = vmatprep.subr.bf16.mxu0 0
    %122 = vmatpush1.bf16.msra.mxu0 0
    %123 = vmatprep.subr.bf16.mxu0 0
    %124 = vmatpush1.bf16.msra.mxu0 0
    %125 = vmatprep.subr.bf16.mxu0 0
    %126 = vmatpush1.bf16.msra.mxu0 0
    %127 = vmatprep.subr.bf16.mxu0 0
    %128 = vmatpush1.bf16.msra.mxu0 0
    %129 = vmatprep.subr.bf16.mxu0 0
    %130 = vmatpush1.bf16.msra.mxu0 0
    %131 = vmatprep.subr.bf16.mxu0 0
    %132 = vmatpush1.bf16.msra.mxu0 0
    %133 = vmatprep.subr.bf16.mxu0 0
    %134 = vmatpush1.bf16.msra.mxu0 0
    %135 = vmatprep.subr.bf16.mxu0 0
    %136 = vmatpush1.bf16.msra.mxu0 0
    %137 = vmatprep.subr.bf16.mxu0 0
    %138 = vmatpush1.bf16.msra.mxu0 0
    %139 = vmatprep.subr.bf16.mxu0 0
    %140 = vmatpush1.bf16.msra.mxu0 0
    %141 = vmatprep.subr.bf16.mxu0 0
    %142 = vmatpush1.bf16.msra.mxu0 0
    %143 = vmatprep.subr.bf16.mxu0 0
    %144 = vmatpush1.bf16.msra.mxu0 0
    %145 = vmatprep.subr.bf16.mxu0 0
    %146 = vmatpush1.bf16.msra.mxu0 0
    %147 = vmatprep.mubr.bf16.mxu0 0
    %148 = vmatmul.mubr.bf16.gmra.mrb[0].mxu0 %v111
    %v149 = vpop.f32.mrb[0].mxu0
    %v150 = vadd.f32 %v107, %v149
    %v151 = vpop.f32.mrb[0].mxu0
    %v152 = vpop.f32.mrb[0].mxu0
    %v153 = vpop.f32.mrb[0].mxu0
    %154 = vdwg.mxu0
    %v155 = vmul.f32 %v150, 0.01
    %v156 = vmax.f32 %v150, %v155
    %v157 = vpack.c.bf16 %v156, %v156
    %159 = vrot.lane.b32.xlu0 %v157, 124
    %v160 = vpop.permute.xlu0 %159
    %vm161 = vcmask 187392
    %v164 = vsel %vm161, %v157, %v160
    %165 = vrot.lane.b32.xlu0 %v157, 127
    %v166 = vpop.permute.xlu0 %165
    %167 = vrot.lane.b32.xlu0 %v157, 123
    %v168 = vpop.permute.xlu0 %167
    %v171 = vsel %vm161, %v166, %v168
    %172 = vrot.lane.b32.xlu0 %v157, 126
    %v173 = vpop.permute.xlu0 %172
    %174 = vrot.lane.b32.xlu0 %v157, 122
    %v175 = vpop.permute.xlu0 %174
    %v178 = vsel %vm161, %v173, %v175
    %179 = vrot.lane.b32.xlu0 %v157, 125
    %v180 = vpop.permute.xlu0 %179
    %181 = vrot.lane.b32.xlu0 %v157, 121
    %v182 = vpop.permute.xlu0 %181
    %v185 = vsel %vm161, %v180, %v182
    %186 = vrot.lane.b32.xlu0 %v157, 120
    %v187 = vpop.permute.xlu0 %186
    %v189 = vsel %vm161, %v160, %v187
    %v191 = vrot.slane %v171, 6
    %v193 = vrot.slane %v178, 4
    %v195 = vrot.slane %v185, 2
    %v197 = vsel %vm92, %v164, %v191
    %v199 = vsel %vm95, %v197, %v193
    %v201 = vsel %vm98, %v199, %v195
    %v203 = vld [vmem:[%s4] sm:$0xf]
    %v204 = vld [vmem:[%s5] sm:$0xff]
    %206 = vset.pattern.permute.xlu0 0
    %207 = vperm.xlu0 %206, %v204
    %v208 = vpop.permute.xlu0 %207
    %v211 = vsel %vm109, %v203, 0
    %v213 = vsel %vm92, %v189, 0
    %215 = vmatprep.subr.bf16.mxu0 0
    %216 = vmatpush1.bf16.msra.mxu0 %v201
    %217 = vmatprep.subr.bf16.mxu0 0
    %218 = vmatpush1.bf16.msra.mxu0 %v213
    %219 = vmatprep.subr.bf16.mxu0 0
    %220 = vmatpush1.bf16.msra.mxu0 0
    %221 = vmatprep.subr.bf16.mxu0 0
    %222 = vmatpush1.bf16.msra.mxu0 0
    %223 = vmatprep.subr.bf16.mxu0 0
    %224 = vmatpush1.bf16.msra.mxu0 0
    %225 = vmatprep.subr.bf16.mxu0 0
    %226 = vmatpush1.bf16.msra.mxu0 0
    %227 = vmatprep.subr.bf16.mxu0 0
    %228 = vmatpush1.bf16.msra.mxu0 0
    %229 = vmatprep.subr.bf16.mxu0 0
    %230 = vmatpush1.bf16.msra.mxu0 0
    %231 = vmatprep.subr.bf16.mxu0 0
    %232 = vmatpush1.bf16.msra.mxu0 0
    %233 = vmatprep.subr.bf16.mxu0 0
    %234 = vmatpush1.bf16.msra.mxu0 0
    %235 = vmatprep.subr.bf16.mxu0 0
    %236 = vmatpush1.bf16.msra.mxu0 0
    %237 = vmatprep.subr.bf16.mxu0 0
    %238 = vmatpush1.bf16.msra.mxu0 0
    %239 = vmatprep.subr.bf16.mxu0 0
    %240 = vmatpush1.bf16.msra.mxu0 0
    %241 = vmatprep.subr.bf16.mxu0 0
    %242 = vmatpush1.bf16.msra.mxu0 0
    %243 = vmatprep.subr.bf16.mxu0 0
    %244 = vmatpush1.bf16.msra.mxu0 0
    %245 = vmatprep.subr.bf16.mxu0 0
    %246 = vmatpush1.bf16.msra.mxu0 0
    %247 = vmatprep.mubr.bf16.mxu0 0
    %248 = vmatmul.mubr.bf16.gmra.mrb[0].mxu0 %v211
    %v249 = vpop.f32.mrb[0].mxu0
    %v250 = vadd.f32 %v208, %v249
    %v251 = vpop.f32.mrb[0].mxu0
    %v252 = vpop.f32.mrb[0].mxu0
    %v253 = vpop.f32.mrb[0].mxu0
    %254 = vdwg.mxu0
    %v255 = vmul.f32 %v250, 0.01
    %v256 = vmax.f32 %v250, %v255
    %v257 = vsel %vm161, %v256, 0.0
    %258 = vst [vmem:[#allocation4] sm:$0xff] %v257
    %260 = vrot.lane.b32.xlu0 %v256, 105
    %v261 = vpop.permute.xlu0 %260
    %v263 = vsel %vm161, %v261, 0.0
    %s264 = scalar_lea.vmem [#allocation4], 8
    %265 = vst [vmem:[%s264] sm:$0xff] %v263
    %v266 = vpack.c.bf16 %v256, %v256
    %v267 = vld [vmem:[%s1] sm:$0xf]
    %v268 = vld [vmem:[%s1 + $0x4] sm:$0xf]
    %v270 = vrot.slane %v266, 4
    %271 = vrot.lane.b32.xlu0 %v270, 2
    %v272 = vpop.permute.xlu0 %271
    %v275 = vsel %vm95, %v267, %v272
    %276 = vrot.lane.b32.xlu0 %v270, 107
    %v277 = vpop.permute.xlu0 %276
    %v280 = vsel %vm95, %v268, %v277
    %282 = vrot.lane.b32.xlu0 %v275, 126
    %v283 = vpop.permute.xlu0 %282
    %285 = vrot.lane.b32.xlu0 %v280, 17
    %v286 = vpop.permute.xlu0 %285
    %vm287 = vcmask 154624
    %v290 = vsel %vm287, %v283, %v286
    %292 = vrot.lane.b32.xlu0 %v275, 125
    %v293 = vpop.permute.xlu0 %292
    %294 = vrot.lane.b32.xlu0 %v280, 16
    %v295 = vpop.permute.xlu0 %294
    %v298 = vsel %vm287, %v293, %v295
    %300 = vrot.lane.b32.xlu0 %v275, 124
    %v301 = vpop.permute.xlu0 %300
    %302 = vrot.lane.b32.xlu0 %v280, 15
    %v303 = vpop.permute.xlu0 %302
    %v306 = vsel %vm287, %v301, %v303
    %308 = vrot.lane.b32.xlu0 %v275, 123
    %v309 = vpop.permute.xlu0 %308
    %310 = vrot.lane.b32.xlu0 %v280, 14
    %v311 = vpop.permute.xlu0 %310
    %v314 = vsel %vm287, %v309, %v311
    %316 = vrot.lane.b32.xlu0 %v275, 122
    %v317 = vpop.permute.xlu0 %316
    %318 = vrot.lane.b32.xlu0 %v280, 13
    %v319 = vpop.permute.xlu0 %318
    %v322 = vsel %vm287, %v317, %v319
    %v324 = vld [vmem:[%s6] sm:$0xf]
    %v325 = vld [vmem:[%s7] sm:$0xff]
    %327 = vset.pattern.permute.xlu0 0
    %328 = vperm.xlu0 %327, %v325
    %v329 = vpop.permute.xlu0 %328
    %vm331 = vcmask 654336
    %v333 = vsel %vm331, %v324, 0
    %335 = vmatprep.subr.bf16.mxu0 0
    %336 = vmatpush1.bf16.msra.mxu0 %v290
    %337 = vmatprep.subr.bf16.mxu0 0
    %338 = vmatpush1.bf16.msra.mxu0 %v298
    %339 = vmatprep.subr.bf16.mxu0 0
    %340 = vmatpush1.bf16.msra.mxu0 %v306
    %341 = vmatprep.subr.bf16.mxu0 0
    %342 = vmatpush1.bf16.msra.mxu0 %v314
    %343 = vmatprep.subr.bf16.mxu0 0
    %344 = vmatpush1.bf16.msra.mxu0 %v322
    %345 = vmatprep.subr.bf16.mxu0 0
    %346 = vmatpush1.bf16.msra.mxu0 0
    %347 = vmatprep.subr.bf16.mxu0 0
    %348 = vmatpush1.bf16.msra.mxu0 0
    %349 = vmatprep.subr.bf16.mxu0 0
    %350 = vmatpush1.bf16.msra.mxu0 0
    %351 = vmatprep.subr.bf16.mxu0 0
    %352 = vmatpush1.bf16.msra.mxu0 0
    %353 = vmatprep.subr.bf16.mxu0 0
    %354 = vmatpush1.bf16.msra.mxu0 0
    %355 = vmatprep.subr.bf16.mxu0 0
    %356 = vmatpush1.bf16.msra.mxu0 0
    %357 = vmatprep.subr.bf16.mxu0 0
    %358 = vmatpush1.bf16.msra.mxu0 0
    %359 = vmatprep.subr.bf16.mxu0 0
    %360 = vmatpush1.bf16.msra.mxu0 0
    %361 = vmatprep.subr.bf16.mxu0 0
    %362 = vmatpush1.bf16.msra.mxu0 0
    %363 = vmatprep.subr.bf16.mxu0 0
    %364 = vmatpush1.bf16.msra.mxu0 0
    %365 = vmatprep.subr.bf16.mxu0 0
    %366 = vmatpush1.bf16.msra.mxu0 0
    %367 = vmatprep.mubr.bf16.mxu0 0
    %368 = vmatmul.mubr.bf16.gmra.mrb[0].mxu0 %v333
    %v369 = vpop.f32.mrb[0].mxu0
    %v370 = vadd.f32 %v329, %v369
    %v371 = vpop.f32.mrb[0].mxu0
    %v372 = vpop.f32.mrb[0].mxu0
    %v373 = vpop.f32.mrb[0].mxu0
    %374 = vdwg.mxu0
    %v375 = vmul.f32 %v370, 0.01
    %v376 = vmax.f32 %v370, %v375
    %v377 = vsel %vm287, %v376, 0.0
    %378 = vst [vmem:[#allocation2] sm:$0xff] %v377
    %380 = vrot.lane.b32.xlu0 %v376, 109
    %v381 = vpop.permute.xlu0 %380
    %v383 = vsel %vm287, %v381, 0.0
    %s384 = scalar_lea.vmem [#allocation2], 8
    %385 = vst [vmem:[%s384] sm:$0xff] %v383
    // Predicated region
    $region34: #{upsampling_block_forward.1} parent=1 // pred_check
      _
    $region35: #{upsampling_block_forward.1} parent=1 // pred_check_branch
      %387 = sbr.rel (0) target = $region37
    $region36: #{upsampling_block_forward.1} parent=1 // pred_region
      %s389 = ssub.s32 256, 256
      %390 = vsyncadd [#allocation3], %s389
      %s391 = sshll.u32 [#allocation2], 4
      %s392 = int_to_ptr.vmem [resolvable:$true] %s391
      %397 = dma.vmem_to_hbm [thread:$0]  %s392, 256, %s8, [#allocation3], 128, 128, 8
    $region37: #{upsampling_block_forward.1} parent=1 // pred_fallthru
      _
    // Predicated region
    $region38: #{upsampling_block_forward.1} parent=1 // pred_check
      _
    $region39: #{upsampling_block_forward.1} parent=1 // pred_check_branch
      %399 = sbr.rel (0) target = $region41
    $region40: #{upsampling_block_forward.1} parent=1 // pred_region
      %s401 = ssub.s32 256, 256
      %402 = vsyncadd [#allocation5], %s401
      %s403 = sshll.u32 [#allocation4], 4
      %s404 = int_to_ptr.vmem [resolvable:$true] %s403
      %409 = dma.vmem_to_hbm [thread:$0]  %s404, 256, %s9, [#allocation5], 128, 128, 8
    $region41: #{upsampling_block_forward.1} parent=1 // pred_fallthru
      _
    // Predicated region
    $region42: #{upsampling_block_forward.1} parent=1 // pred_check
      _
    $region43: #{upsampling_block_forward.1} parent=1 // pred_check_branch
      %411 = sbr.rel (0) target = $region45
    $region44: #{upsampling_block_forward.1} parent=1 // pred_region
      %412 = dma.done [#allocation3], 256
    $region45: #{upsampling_block_forward.1} parent=1 // pred_fallthru
      _
    // Predicated region
    $region46: #{upsampling_block_forward.1} parent=1 // pred_check
      _
    $region47: #{upsampling_block_forward.1} parent=1 // pred_check_branch
      %414 = sbr.rel (0) target = $region49
    $region48: #{upsampling_block_forward.1} parent=1 // pred_region
      %415 = dma.done [#allocation5], 256
    $region49: #{upsampling_block_forward.1} parent=1 // pred_fallthru
      _
    %416 = vsyncpa [#allocation3], 1
    %417 = vsyncpa [#allocation5], 1

</llo_original>
